<compile_context>
chip_gen: v7x
topology: tpu7x:2x2x1
jax: 0.10.0
libtpu: 0.0.40
codegen_flags: <defaults>
</compile_context>

<pallas_src>
import jax
import jax.numpy as jnp
from jax.experimental import pallas as pl
from jax.experimental.pallas import tpu as pltpu


def _round_up(x, m):
    return ((x + m - 1) // m) * m


def _make_kernel(N, Fout, use_bias):
    def kernel(text_ref, adj_ref, w_ref, *rest):
        if use_bias:
            bias_ref, out_ref, hidden_ref = rest
        else:
            out_ref, hidden_ref = rest

        b = pl.program_id(0)

        # Whole-batch projection, computed once and kept in VMEM scratch.
        @pl.when(b == 0)
        def _():
            hidden_ref[...] = jnp.dot(
                text_ref[...], w_ref[...], preferred_element_type=jnp.float32
            )

        row0 = pl.multiple_of(b * N, N)
        hidden_b = hidden_ref[pl.ds(row0, N), :]          # (N, Fout_pad)
        adj = adj_ref[...]                                # (N, N)

        # agg[:, :Fout] = adj @ hidden      (the aggregation)
        # agg[:,  Fout] = row-sum of adj    (ones-column trick)
        agg = jnp.dot(adj, hidden_b, preferred_element_type=jnp.float32)

        denom = agg[:, Fout:Fout + 1] + 1.0               # (N, 1)
        out = agg * pl.reciprocal(denom)                  # EUP recip + VPU mul
        if use_bias:
            out = out + bias_ref[...]
        out_ref[...] = out.astype(out_ref.dtype)

    return kernel


def graph_convolution(text, adj, weight, bias=None):
    """text: (B, N, Fin), adj: (B, N, N), weight: (Fin, Fout), bias: (Fout,) or None."""
    B, N, Fin = text.shape
    Fin_w, Fout = weight.shape
    assert Fin_w == Fin

    f32 = jnp.float32
    # +1 leaves room for the ones column even when Fin/Fout are multiples of 128.
    Fin_pad = _round_up(Fin + 1, 128)
    Fout_pad = _round_up(Fout + 1, 128)

    # Lane-dense padded operands.  text gets an all-ones feature column at
    # index Fin; weight gets a 1.0 at [Fin, Fout] so hidden[:, Fout] == 1.
    text_p = jnp.zeros((B * N, Fin_pad), f32)
    text_p = text_p.at[:, :Fin].set(text.reshape(B * N, Fin).astype(f32))
    text_p = text_p.at[:, Fin].set(1.0)

    w_p = jnp.zeros((Fin_pad, Fout_pad), f32)
    w_p = w_p.at[:Fin, :Fout].set(weight.astype(f32))
    w_p = w_p.at[Fin, Fout].set(1.0)

    use_bias = bias is not None

    inputs = [text_p, adj.astype(f32), w_p]
    in_specs = [
        # Whole-batch text block: constant block index -> stays resident, no re-DMA.
        pl.BlockSpec((B * N, Fin_pad), lambda b: (0, 0)),
        # One adjacency matrix per grid step (leading batch dim squeezed).
        pl.BlockSpec((None, N, N), lambda b: (b, 0, 0)),
        pl.BlockSpec((Fin_pad, Fout_pad), lambda b: (0, 0)),
    ]
    if use_bias:
        bias_p = jnp.zeros((1, Fout_pad), f32).at[0, :Fout].set(bias.astype(f32))
        inputs.append(bias_p)
        in_specs.append(pl.BlockSpec((1, Fout_pad), lambda b: (0, 0)))

    kernel = _make_kernel(N=N, Fout=Fout, use_bias=use_bias)

    out_p = pl.pallas_call(
        kernel,
        out_shape=jax.ShapeDtypeStruct((B, N, Fout_pad), text.dtype),
        grid_spec=pltpu.PrefetchScalarGridSpec(
            num_scalar_prefetch=0,
            grid=(B,),
            in_specs=in_specs,
            out_specs=pl.BlockSpec((None, N, Fout_pad), lambda b: (b, 0, 0)),
            scratch_shapes=[pltpu.VMEM((B * N, Fout_pad), jnp.float32)],
        ),
        compiler_params=pltpu.CompilerParams(
            # The step-0 projection into scratch is consumed by later steps, so
            # the batch axis carries a cross-iteration dependency -> "arbitrary".
            dimension_semantics=("arbitrary",),
        ),
    )(*inputs)

    # Slice the true Fout back out of the lane-padded output.
    return out_p[:, :, :Fout]


def reference(text, adj, weight, bias):
    hidden = jnp.matmul(text, weight)
    denom = jnp.sum(adj, axis=2, keepdims=True) + 1.0
    out = jnp.matmul(adj, hidden) / denom
    if bias is not None:
        out = out + bias
    return out


if __name__ == "__main__":
    # Small shapes consistent with the module: batch=2, nodes(seq)=8,
    # in_features=32, out_features=32.
    B, N, Fin, Fout = 2, 8, 32, 32

    key = jax.random.PRNGKey(0)
    k_text, k_adj, k_w, k_b = jax.random.split(key, 4)

    text = jax.random.normal(k_text, (B, N, Fin), dtype=jnp.float32)
    adj = jax.random.uniform(k_adj, (B, N, N), dtype=jnp.float32)
    weight = jax.random.normal(k_w, (Fin, Fout), dtype=jnp.float32) * 0.1
    bias = jax.random.normal(k_b, (Fout,), dtype=jnp.float32) * 0.1

    out = graph_convolution(text, adj, weight, bias)
    out = jax.block_until_ready(out)

    ref = reference(text, adj, weight, bias)
    assert out.shape == (B, N, Fout)
    # Tolerance: the row-sum now comes from the MXU (ones column) and the divide
    # is reciprocal+multiply, so rounding differs slightly from the pure-XLA ref.
    assert jnp.allclose(out, ref, atol=1e-4, rtol=1e-4), "mismatch vs reference"

    # Also exercise the bias=None variant (static kernel specialization).
    out_nb = jax.block_until_ready(graph_convolution(text, adj, weight, None))
    ref_nb = reference(text, adj, weight, None)
    assert jnp.allclose(out_nb, ref_nb, atol=1e-4, rtol=1e-4), "mismatch (no bias)"

    print("KERNEL_OK")
</pallas_src>

<mosaic_0001>
module attributes {stable_mosaic.version = 11 : i64} {
  func.func @kernel(%arg0: i32, %arg1: memref<16x128xf32, #tpu.memory_space<vmem>>, %arg2: memref<1x8x8xf32, #tpu.memory_space<vmem>>, %arg3: memref<128x128xf32, #tpu.memory_space<vmem>>, %arg4: memref<1x128xf32, #tpu.memory_space<vmem>>, %arg5: memref<1x8x128xf32, #tpu.memory_space<vmem>>, %arg6: memref<16x128xf32, #tpu.memory_space<vmem>>) attributes {dimension_semantics = [#tpu.dimension_semantics<arbitrary>], iteration_bounds = array<i64: 2>, scalar_prefetch = 0 : i64, scratch_operands = 1 : i64, tpu.core_type = #tpu.core_type<tc>, window_params = [{pipeline_mode = #tpu.pipeline_mode<synchronous>, transform_indices = @transform_0, window_bounds = array<i64: 16, 128>}, {transform_indices = @transform_1, window_bounds = array<i64: 1, 8, 8>}, {pipeline_mode = #tpu.pipeline_mode<synchronous>, transform_indices = @transform_2, window_bounds = array<i64: 128, 128>}, {pipeline_mode = #tpu.pipeline_mode<synchronous>, transform_indices = @transform_3, window_bounds = array<i64: 1, 128>}, {transform_indices = @transform_4, window_bounds = array<i64: 1, 8, 128>}]} {
    %c0_i32 = arith.constant 0 : i32
    %0 = arith.cmpi eq, %arg0, %c0_i32 : i32
    %1 = arith.extui %0 : i1 to i32
    %c0_i32_0 = arith.constant 0 : i32
    %2 = arith.cmpi ne, %1, %c0_i32_0 : i32
    scf.if %2 {
      %c0_10 = arith.constant 0 : index
      %c0_11 = arith.constant 0 : index
      %22 = vector.load %arg1[%c0_10, %c0_11] : memref<16x128xf32, #tpu.memory_space<vmem>>, vector<16x128xf32>
      %c0_12 = arith.constant 0 : index
      %c0_13 = arith.constant 0 : index
      %23 = vector.load %arg3[%c0_12, %c0_13] : memref<128x128xf32, #tpu.memory_space<vmem>>, vector<128x128xf32>
      %cst_14 = arith.constant dense<0.000000e+00> : vector<16x128xf32>
      %24 = tpu.matmul %22, %23, %cst_14 {dimension_numbers = #tpu.dot_dimension_numbers<[1], [0], [0], [1], [0, 0, 1, 1], [], []>} : vector<16x128xf32>, vector<128x128xf32>, vector<16x128xf32> -> vector<16x128xf32>
      %c0_15 = arith.constant 0 : index
      %c0_16 = arith.constant 0 : index
      %25 = vector.load %arg6[%c0_15, %c0_16] : memref<16x128xf32, #tpu.memory_space<vmem>>, vector<16x128xf32>
      tpu.vector_store %arg6[%c0_15, %c0_16], %24 {strides = array<i32>} : memref<16x128xf32, #tpu.memory_space<vmem>>, vector<16x128xf32>,
    } else {
    }
    %c8_i32 = arith.constant 8 : i32
    %3 = arith.muli %arg0, %c8_i32 : i32
    %4 = tpu.assume_multiple %3, 8 : i32
    %5 = arith.index_cast %4 : i32 to index
    %c0 = arith.constant 0 : index
    %6 = vector.load %arg6[%5, %c0] : memref<16x128xf32, #tpu.memory_space<vmem>>, vector<8x128xf32>
    %c0_1 = arith.constant 0 : index
    %c0_2 = arith.constant 0 : index
    %c0_3 = arith.constant 0 : index
    %7 = vector.load %arg2[%c0_1, %c0_2, %c0_3] : memref<1x8x8xf32, #tpu.memory_space<vmem>>, vector<1x8x8xf32>
    %8 = vector.shape_cast %7 : vector<1x8x8xf32> to vector<8x8xf32>
    %cst = arith.constant dense<0.000000e+00> : vector<8x128xf32>
    %9 = tpu.matmul %8, %6, %cst {dimension_numbers = #tpu.dot_dimension_numbers<[1], [0], [0], [1], [0, 0, 1, 1], [], []>} : vector<8x8xf32>, vector<8x128xf32>, vector<8x128xf32> -> vector<8x128xf32>
    %10 = vector.extract_strided_slice %9 {offsets = [0, 32], sizes = [8, 1], strides = [1, 1]} : vector<8x128xf32> to vector<8x1xf32>
    %cst_4 = arith.constant 1.000000e+00 : f32
    %11 = vector.broadcast %cst_4 : f32 to vector<8x1xf32>
    %12 = arith.addf %10, %11 : vector<8x1xf32>
    %13 = tpu.reciprocal %12 : vector<8x1xf32> -> vector<8x1xf32>
    %14 = vector.broadcast %13 : vector<8x1xf32> to vector<8x128xf32>
    %15 = arith.mulf %9, %14 : vector<8x128xf32>
    %c0_5 = arith.constant 0 : index
    %c0_6 = arith.constant 0 : index
    %16 = vector.load %arg4[%c0_5, %c0_6] : memref<1x128xf32, #tpu.memory_space<vmem>>, vector<1x128xf32>
    %17 = vector.broadcast %16 : vector<1x128xf32> to vector<8x128xf32>
    %18 = arith.addf %15, %17 : vector<8x128xf32>
    %c0_7 = arith.constant 0 : index
    %c0_8 = arith.constant 0 : index
    %c0_9 = arith.constant 0 : index
    %19 = vector.load %arg5[%c0_7, %c0_8, %c0_9] : memref<1x8x128xf32, #tpu.memory_space<vmem>>, vector<1x8x128xf32>
    %20 = vector.shape_cast %19 : vector<1x8x128xf32> to vector<8x128xf32>
    %21 = vector.shape_cast %18 : vector<8x128xf32> to vector<1x8x128xf32>
    tpu.vector_store %arg5[%c0_7, %c0_8, %c0_9], %21 {strides = array<i32>} : memref<1x8x128xf32, #tpu.memory_space<vmem>>, vector<1x8x128xf32>,
    return
  }
  func.func @transform_0(%arg0: i32) -> (i32, i32) {
    %c0_i32 = arith.constant 0 : i32
    %c0_i32_0 = arith.constant 0 : i32
    %c0_i32_1 = arith.constant 0 : i32
    return %c0_i32, %c0_i32_0 : i32, i32
  }
  func.func @transform_1(%arg0: i32) -> (i32, i32, i32) {
    %c0_i32 = arith.constant 0 : i32
    %c0_i32_0 = arith.constant 0 : i32
    %c0_i32_1 = arith.constant 0 : i32
    return %arg0, %c0_i32, %c0_i32_0 : i32, i32, i32
  }
  func.func @transform_2(%arg0: i32) -> (i32, i32) {
    %c0_i32 = arith.constant 0 : i32
    %c0_i32_0 = arith.constant 0 : i32
    %c0_i32_1 = arith.constant 0 : i32
    return %c0_i32, %c0_i32_0 : i32, i32
  }
  func.func @transform_3(%arg0: i32) -> (i32, i32) {
    %c0_i32 = arith.constant 0 : i32
    %c0_i32_0 = arith.constant 0 : i32
    %c0_i32_1 = arith.constant 0 : i32
    return %c0_i32, %c0_i32_0 : i32, i32
  }
  func.func @transform_4(%arg0: i32) -> (i32, i32, i32) {
    %c0_i32 = arith.constant 0 : i32
    %c0_i32_0 = arith.constant 0 : i32
    %c0_i32_1 = arith.constant 0 : i32
    return %arg0, %c0_i32, %c0_i32_0 : i32, i32, i32
  }
}

</mosaic_0001>

<llo_original>
// kernel: tpu_custom_call.1
$region0: #{tpu_custom_call.1}
  #allocation0 [shape = 'u32[]', space=smem, size = 0x4, offset = 0x4, fixed_abs, tag = 'smem constant byte address 0x4 - core index']
  #allocation1 [shape = 'u32[144,128]{1,0:T(1,128)}', space=vmem, size = 0x12000, scoped, tag = 'internal scratch']
  #allocation2 [shape = 'f32[16,128]{1,0:T(8,128)}', space=vmem, size = 0x2000, scoped, tag = 'scratch operand']
  %s0 = inlined_call_operand.hbm [shape: f32[16,128], index: 0, kind: input, shape index: {}]
  %s1 = inlined_call_operand.hbm [shape: f32[2,8,8], index: 1, kind: input, shape index: {}]
  %s2 = inlined_call_operand.hbm [shape: f32[128,128], index: 2, kind: input, shape index: {}]
  %s3 = inlined_call_operand.vmem [shape: f32[1,128], index: 3, kind: input, shape index: {}]
  %s4 = inlined_call_operand.hbm [shape: f32[2,8,128], index: 4, kind: output, shape index: {}]
  %s5 = sld [smem:[#allocation0]]
  $region65: #{tpu_custom_call.1} parent=0
    _
  %s7 = ssub.s32 1, %s5
  %s8 = scalar_select 0, %s7, %s5
  $region1: #{tpu_custom_call.1} parent=0
    #allocation3 [shape = 'u8[8192]{0}', space=vmem, size = 0x2000, scoped, tag = 'input window, operand 0, single buffered']
    #allocation4 [shape = 's32[2]{0}', space=sflag, size = 0x8, scoped, tag = 'scoped memory for tpu_custom_call.1']
    #allocation5 [shape = 's32[2]{0}', space=sflag, size = 0x8, scoped, tag = 'scoped memory for tpu_custom_call.1']
    #allocation6 [shape = 'u8[8192]{0}', space=vmem, size = 0x2000, scoped, tag = 'input window, operand 1']
    #allocation7 [shape = 's32[2]{0}', space=sflag, size = 0x8, scoped, tag = 'scoped memory for tpu_custom_call.1']
    #allocation8 [shape = 'u8[65536]{0}', space=vmem, size = 0x10000, scoped, tag = 'input window, operand 2, single buffered']
    #allocation9 [shape = 'u8[8192]{0}', space=vmem, size = 0x2000, scoped, tag = 'output window, operand 0']
    %9 = vsyncpa [#allocation4], 0
    %10 = vsyncpa [#allocation7], 0
    %s11 = scalar_lea.sflag [#allocation7], 1
    %12 = vsyncpa %s11, 0
    %13 = vsyncpa [#allocation5], 0
    %s14 = scalar_lea.sflag [#allocation5], 1
    %15 = vsyncpa %s14, 0
    loop: start=0, step=1, limit=4
    $region2: #{tpu_custom_call.1} parent=1 // loop_pre_header
      _
    $region3: #{tpu_custom_call.1} parent=1 // loop_header
      %s17 = sphi 0, %s21
      %p18 = scmp.ge.s32.totalorder %s17, 4
      %s25 = sphi 0, %s25
      %s27 = sphi 0, %s25
      %s28 = sphi 0, %s27
      %s42 = sphi 0, %s28
      %s48 = sphi 0, %s50
      %s51 = sphi 0, %s48
      %s52 = sphi 0, %s51
      %s68 = sphi 0, %s52
      %s72 = sphi 0, %s72
      %s74 = sphi 0, %s72
      %s75 = sphi 0, %s74
      %s89 = sphi 0, %s75
      %s93 = sphi 0, %s93
      %s95 = sphi 0, %s93
      %s96 = sphi 0, %s95
      %s110 = sphi 0, %s96
      %s116 = sphi 0, %s118
      %s119 = sphi 0, %s116
      %s120 = sphi 0, %s119
      %s136 = sphi 0, %s120
    $region4: #{tpu_custom_call.1} parent=1 // loop_header_branch
      %20 = sbr.rel (%p18) target = $region8
    $region5: #{tpu_custom_call.1} parent=1 // loop_body
      %s22 = ssub.s32 %s17, 1
      %s23 = ssub.s32 %s17, 2
      %s24 = sadd.s32 %s17, 1
      %s26 = sadd.s32 %s25, 1
      %p29 = scmp.eq.s32.totalorder %s17, 1
      %p30 = scmp.ne.s32.totalorder %s25, %s27
      %p31 = scmp.eq.s32.totalorder %s17, 0
      %p32 = por %p30, %p31
      %p33 = scmp.ne.s32.totalorder %s25, %s27
      %p34 = scmp.eq.s32.totalorder %s22, 1
      %p35 = por %p33, %p34
      %p36 = scmp.ne.s32.totalorder %s27, %s28
      %p37 = scmp.eq.s32.totalorder %s22, 0
      %p38 = por %p36, %p37
      %p39 = scmp.ne.s32.totalorder %s27, %s28
      %p40 = scmp.eq.s32.totalorder %s23, 1
      %p41 = por %p39, %p40
      %p43 = scmp.ne.s32.totalorder %s28, %s42
      %p44 = scmp.eq.s32.totalorder %s23, 0
      %p45 = por %p43, %p44
      %s46 = ssub.s32 %s17, %s24
      %p47 = scmp.eq.s32.totalorder %s46, 0
      %s49 = sadd.s32 %s48, 1
      %s50 = scalar_select %p47, %s48, %s49
      %p53 = pneg %p47
      %p54 = scmp.eq.s32.totalorder %s17, 1
      %p55 = por %p53, %p54
      %p56 = scmp.ne.s32.totalorder %s48, %s51
      %p57 = scmp.eq.s32.totalorder %s17, 0
      %p58 = por %p56, %p57
      %p59 = scmp.ne.s32.totalorder %s48, %s51
      %p60 = scmp.eq.s32.totalorder %s22, 1
      %p61 = por %p59, %p60
      %p62 = scmp.ne.s32.totalorder %s51, %s52
      %p63 = scmp.eq.s32.totalorder %s22, 0
      %p64 = por %p62, %p63
      %p65 = scmp.ne.s32.totalorder %s51, %s52
      %p66 = scmp.eq.s32.totalorder %s23, 1
      %p67 = por %p65, %p66
      %p69 = scmp.ne.s32.totalorder %s52, %s68
      %p70 = scmp.eq.s32.totalorder %s23, 0
      %p71 = por %p69, %p70
      %s73 = sadd.s32 %s72, 1
      %p76 = scmp.eq.s32.totalorder %s17, 1
      %p77 = scmp.ne.s32.totalorder %s72, %s74
      %p78 = scmp.eq.s32.totalorder %s17, 0
      %p79 = por %p77, %p78
      %p80 = scmp.ne.s32.totalorder %s72, %s74
      %p81 = scmp.eq.s32.totalorder %s22, 1
      %p82 = por %p80, %p81
      %p83 = scmp.ne.s32.totalorder %s74, %s75
      %p84 = scmp.eq.s32.totalorder %s22, 0
      %p85 = por %p83, %p84
      %p86 = scmp.ne.s32.totalorder %s74, %s75
      %p87 = scmp.eq.s32.totalorder %s23, 1
      %p88 = por %p86, %p87
      %p90 = scmp.ne.s32.totalorder %s75, %s89
      %p91 = scmp.eq.s32.totalorder %s23, 0
      %p92 = por %p90, %p91
      %s94 = sadd.s32 %s93, 1
      %p97 = scmp.eq.s32.totalorder %s17, 1
      %p98 = scmp.ne.s32.totalorder %s93, %s95
      %p99 = scmp.eq.s32.totalorder %s17, 0
      %p100 = por %p98, %p99
      %p101 = scmp.ne.s32.totalorder %s93, %s95
      %p102 = scmp.eq.s32.totalorder %s22, 1
      %p103 = por %p101, %p102
      %p104 = scmp.ne.s32.totalorder %s95, %s96
      %p105 = scmp.eq.s32.totalorder %s22, 0
      %p106 = por %p104, %p105
      %p107 = scmp.ne.s32.totalorder %s95, %s96
      %p108 = scmp.eq.s32.totalorder %s23, 1
      %p109 = por %p107, %p108
      %p111 = scmp.ne.s32.totalorder %s96, %s110
      %p112 = scmp.eq.s32.totalorder %s23, 0
      %p113 = por %p111, %p112
      %s114 = ssub.s32 %s17, %s24
      %p115 = scmp.eq.s32.totalorder %s114, 0
      %s117 = sadd.s32 %s116, 1
      %s118 = scalar_select %p115, %s116, %s117
      %p121 = pneg %p115
      %p122 = scmp.eq.s32.totalorder %s17, 1
      %p123 = por %p121, %p122
      %p124 = scmp.ne.s32.totalorder %s116, %s119
      %p125 = scmp.eq.s32.totalorder %s17, 0
      %p126 = por %p124, %p125
      %p127 = scmp.ne.s32.totalorder %s116, %s119
      %p128 = scmp.eq.s32.totalorder %s22, 1
      %p129 = por %p127, %p128
      %p130 = scmp.ne.s32.totalorder %s119, %s120
      %p131 = scmp.eq.s32.totalorder %s22, 0
      %p132 = por %p130, %p131
      %p133 = scmp.ne.s32.totalorder %s119, %s120
      %p134 = scmp.eq.s32.totalorder %s23, 1
      %p135 = por %p133, %p134
      %p137 = scmp.ne.s32.totalorder %s120, %s136
      %p138 = scmp.eq.s32.totalorder %s23, 0
      %p139 = por %p137, %p138
      %p140 = scmp.le.s32.totalorder 1, %s17
      %p141 = scmp.lt.s32.totalorder %s17, 3
      %p142 = pnand %p140, %p141
      %p143 = pneg %p142
      // Predicated region
      $region9: #{tpu_custom_call.1} parent=5 // pred_check
        _
      $region10: #{tpu_custom_call.1} parent=5 // pred_check_branch
        %145 = sbr.rel (%p142) target = $region12
      $region11: #{tpu_custom_call.1} parent=5 // pred_region
        %s146 = ssub.s32 %s17, 1
        // Predicated region
        $region13: #{tpu_custom_call.1} parent=11 // pred_check
          %p147 = pneg %p38
        $region14: #{tpu_custom_call.1} parent=11 // pred_check_branch
          %149 = sbr.rel (%p147) target = $region16
        $region15: #{tpu_custom_call.1} parent=11 // pred_region
          %s151 = ssub.s32 256, 256
          %152 = vsyncadd [#allocation4], %s151
          %s153 = sshll.u32 [#allocation3], 4
          %s154 = int_to_ptr.vmem [resolvable:$true] %s153
          %159 = dma.hbm_to_vmem [thread:$0]  %s0, 256, %s154, [#allocation4], 128, 128, 8
        $region16: #{tpu_custom_call.1} parent=11 // pred_fallthru
          _
        // Predicated region
        $region17: #{tpu_custom_call.1} parent=11 // pred_check
          %p160 = pneg %p85
        $region18: #{tpu_custom_call.1} parent=11 // pred_check_branch
          %162 = sbr.rel (%p160) target = $region20
        $region19: #{tpu_custom_call.1} parent=11 // pred_region
          %s164 = ssub.s32 2048, 2048
          %165 = vsyncadd [#allocation7], %s164
          %s166 = sshll.u32 [#allocation8], 4
          %s167 = int_to_ptr.vmem [resolvable:$true] %s166
          %172 = dma.hbm_to_vmem [thread:$0]  %s2, 2048, %s167, [#allocation7], 128, 128, 8
        $region20: #{tpu_custom_call.1} parent=11 // pred_fallthru
          _
        // Predicated region
        $region21: #{tpu_custom_call.1} parent=11 // pred_check
          %p173 = pneg %p106
        $region22: #{tpu_custom_call.1} parent=11 // pred_check_branch
          %175 = sbr.rel (%p173) target = $region24
        $region23: #{tpu_custom_call.1} parent=11 // pred_region
          _
        $region24: #{tpu_custom_call.1} parent=11 // pred_fallthru
          _
      $region12: #{tpu_custom_call.1} parent=5 // pred_fallthru
        _
      %p176 = scmp.lt.s32.totalorder %s17, 2
      // Predicated region
      $region25: #{tpu_custom_call.1} parent=5 // pred_check
        %p177 = pneg %p176
      $region26: #{tpu_custom_call.1} parent=5 // pred_check_branch
        %179 = sbr.rel (%p177) target = $region28
      $region27: #{tpu_custom_call.1} parent=5 // pred_region
        // Predicated region
        $region29: #{tpu_custom_call.1} parent=27 // pred_check
          %p180 = pneg %p58
        $region30: #{tpu_custom_call.1} parent=27 // pred_check_branch
          %182 = sbr.rel (%p180) target = $region32
        $region31: #{tpu_custom_call.1} parent=27 // pred_region
          %s183 = sand.u32 %s17, 1
          %s184 = scalar_lea.sflag [#allocation7], %s183
          %s185 = sand.u32 %s48, 1
          %s186 = smul.addr %s185, 8
          %s187 = scalar_lea.vmem [#allocation6], %s186
          %s189 = ssub.s32 128, 128
          %190 = vsyncadd %s184, %s189
          %s191 = smul.addr %s17, 128
          %s192 = scalar_lea.hbm %s1, %s191
          %s194 = sshll.u32 %s187, 4
          %s195 = int_to_ptr.vmem [resolvable:$true] %s194
          %197 = dma.hbm_to_vmem [thread:$0]  %s192, 128, %s195, %s184
        $region32: #{tpu_custom_call.1} parent=27 // pred_fallthru
          _
      $region28: #{tpu_custom_call.1} parent=5 // pred_fallthru
        _
      %p198 = scmp.le.s32.totalorder 1, %s17
      %p199 = scmp.lt.s32.totalorder %s17, 3
      %p200 = pnand %p198, %p199
      %p201 = pneg %p200
      // Predicated region
      $region33: #{tpu_custom_call.1} parent=5 // pred_check
        _
      $region34: #{tpu_custom_call.1} parent=5 // pred_check_branch
        %203 = sbr.rel (%p200) target = $region36
      $region35: #{tpu_custom_call.1} parent=5 // pred_region
        %s204 = ssub.s32 %s17, 1
        // Predicated region
        $region37: #{tpu_custom_call.1} parent=35 // pred_check
          %p205 = pneg %p38
        $region38: #{tpu_custom_call.1} parent=35 // pred_check_branch
          %207 = sbr.rel (%p205) target = $region40
        $region39: #{tpu_custom_call.1} parent=35 // pred_region
          %208 = dma.done [#allocation4], 256
        $region40: #{tpu_custom_call.1} parent=35 // pred_fallthru
          _
        %s209 = sand.u32 %s22, 1
        %s210 = scalar_lea.sflag [#allocation7], %s209
        %s211 = sand.u32 %s51, 1
        %s212 = smul.addr %s211, 8
        %s213 = scalar_lea.vmem [#allocation6], %s212
        // Predicated region
        $region41: #{tpu_custom_call.1} parent=35 // pred_check
          %p214 = pneg %p64
        $region42: #{tpu_custom_call.1} parent=35 // pred_check_branch
          %216 = sbr.rel (%p214) target = $region44
        $region43: #{tpu_custom_call.1} parent=35 // pred_region
          %217 = dma.done %s210, 128
        $region44: #{tpu_custom_call.1} parent=35 // pred_fallthru
          _
        // Predicated region
        $region45: #{tpu_custom_call.1} parent=35 // pred_check
          %p218 = pneg %p85
        $region46: #{tpu_custom_call.1} parent=35 // pred_check_branch
          %220 = sbr.rel (%p218) target = $region48
        $region47: #{tpu_custom_call.1} parent=35 // pred_region
          %221 = dma.done [#allocation7], 2048
        $region48: #{tpu_custom_call.1} parent=35 // pred_fallthru
          _
        %p222 = pneg %p38
        %p223 = pneg %p35
        %s224 = sand.u32 %s22, 1
        %s225 = scalar_lea.sflag [#allocation7], %s224
        %s226 = sand.u32 %s51, 1
        %s227 = smul.addr %s226, 8
        %s228 = scalar_lea.vmem [#allocation6], %s227
        %p229 = pneg %p64
        %p230 = pneg %p61
        %p231 = pneg %p85
        %p232 = pneg %p82
        %p233 = pneg %p106
        %p234 = pneg %p103
        %p235 = pneg %p132
        %p236 = pneg %p129
        %s237 = sand.u32 %s119, 1
        %s238 = scalar_lea.sflag [#allocation5], %s237
        %s239 = sand.u32 %s119, 1
        %s240 = smul.addr %s239, 8
        %s241 = scalar_lea.vmem [#allocation9], %s240
        %p242 = scmp.eq.s32.totalorder %s22, 0
        // Predicated region
        $region49: #{tpu_custom_call.1} parent=35 // pred_check
          %p243 = pneg %p242
        $region50: #{tpu_custom_call.1} parent=35 // pred_check_branch
          %245 = sbr.rel (%p243) target = $region52
        $region51: #{tpu_custom_call.1} parent=35 // pred_region
          %v246 = vld [vmem:[#allocation3] sm:$0xff]
          %v247 = vld [vmem:[#allocation3 + $0x8] sm:$0xff]
          %v248 = vld [vmem:[#allocation8] sm:$0xff]
          %v249 = vld [vmem:[#allocation8 + $0x8] sm:$0xff]
          %v250 = vld [vmem:[#allocation8 + $0x10] sm:$0xff]
          %v251 = vld [vmem:[#allocation8 + $0x18] sm:$0xff]
          %v252 = vld [vmem:[#allocation8 + $0x20] sm:$0xff]
          %v253 = vld [vmem:[#allocation8 + $0x28] sm:$0xff]
          %v254 = vld [vmem:[#allocation8 + $0x30] sm:$0xff]
          %v255 = vld [vmem:[#allocation8 + $0x38] sm:$0xff]
          %v256 = vld [vmem:[#allocation8 + $0x40] sm:$0xff]
          %v257 = vld [vmem:[#allocation8 + $0x48] sm:$0xff]
          %v258 = vld [vmem:[#allocation8 + $0x50] sm:$0xff]
          %v259 = vld [vmem:[#allocation8 + $0x58] sm:$0xff]
          %v260 = vld [vmem:[#allocation8 + $0x60] sm:$0xff]
          %v261 = vld [vmem:[#allocation8 + $0x68] sm:$0xff]
          %v262 = vld [vmem:[#allocation8 + $0x70] sm:$0xff]
          %v263 = vld [vmem:[#allocation8 + $0x78] sm:$0xff]
          %264 = vmatprep.subr.mxu0 0.0
          %265 = vmatpush1.msra.mxu0 %v248
          %266 = vmatprep.subr.mxu0 0.0
          %267 = vmatpush1.msra.mxu0 %v249
          %268 = vmatprep.subr.mxu0 0.0
          %269 = vmatpush1.msra.mxu0 %v250
          %270 = vmatprep.subr.mxu0 0.0
          %271 = vmatpush1.msra.mxu0 %v251
          %272 = vmatprep.subr.mxu0 0.0
          %273 = vmatpush1.msra.mxu0 %v252
          %274 = vmatprep.subr.mxu0 0.0
          %275 = vmatpush1.msra.mxu0 %v253
          %276 = vmatprep.subr.mxu0 0.0
          %277 = vmatpush1.msra.mxu0 %v254
          %278 = vmatprep.subr.mxu0 0.0
          %279 = vmatpush1.msra.mxu0 %v255
          %280 = vmatprep.subr.mxu0 0.0
          %281 = vmatpush1.msra.mxu0 %v256
          %282 = vmatprep.subr.mxu0 0.0
          %283 = vmatpush1.msra.mxu0 %v257
          %284 = vmatprep.subr.mxu0 0.0
          %285 = vmatpush1.msra.mxu0 %v258
          %286 = vmatprep.subr.mxu0 0.0
          %287 = vmatpush1.msra.mxu0 %v259
          %288 = vmatprep.subr.mxu0 0.0
          %289 = vmatpush1.msra.mxu0 %v260
          %290 = vmatprep.subr.mxu0 0.0
          %291 = vmatpush1.msra.mxu0 %v261
          %292 = vmatprep.subr.mxu0 0.0
          %293 = vmatpush1.msra.mxu0 %v262
          %294 = vmatprep.subr.mxu0 0.0
          %295 = vmatpush1.msra.mxu0 %v263
          %296 = vmatprep.subr.mxu0 0.0
          %297 = vmatpush1.msra.mxu0 0.0
          %298 = vmatprep.subr.mxu0 0.0
          %299 = vmatpush1.msra.mxu0 0.0
          %300 = vmatprep.subr.mxu0 0.0
          %301 = vmatpush1.msra.mxu0 0.0
          %302 = vmatprep.subr.mxu0 0.0
          %303 = vmatpush1.msra.mxu0 0.0
          %304 = vmatprep.subr.mxu0 0.0
          %305 = vmatpush1.msra.mxu0 0.0
          %306 = vmatprep.subr.mxu0 0.0
          %307 = vmatpush1.msra.mxu0 0.0
          %308 = vmatprep.subr.mxu0 0.0
          %309 = vmatpush1.msra.mxu0 0.0
          %310 = vmatprep.subr.mxu0 0.0
          %311 = vmatpush1.msra.mxu0 0.0
          %312 = vmatprep.subr.mxu0 0.0
          %313 = vmatpush1.msra.mxu0 0.0
          %314 = vmatprep.subr.mxu0 0.0
          %315 = vmatpush1.msra.mxu0 0.0
          %316 = vmatprep.subr.mxu0 0.0
          %317 = vmatpush1.msra.mxu0 0.0
          %318 = vmatprep.subr.mxu0 0.0
          %319 = vmatpush1.msra.mxu0 0.0
          %320 = vmatprep.subr.mxu0 0.0
          %321 = vmatpush1.msra.mxu0 0.0
          %322 = vmatprep.subr.mxu0 0.0
          %323 = vmatpush1.msra.mxu0 0.0
          %324 = vmatprep.subr.mxu0 0.0
          %325 = vmatpush1.msra.mxu0 0.0
          %326 = vmatprep.subr.mxu0 0.0
          %327 = vmatpush1.msra.mxu0 0.0
          %328 = vmatprep.mubr.f32.mxu0 0.0
          %329 = vmatmul.mubr.f32.gmra.mrb[0].mxu0 %v246
          %v330 = vpop.f32.mrb[0].mxu0
          %v331 = vadd.f32 0.0, %v330
          %v332 = vpop.f32.mrb[0].mxu0
          %333 = vmatprep.mubr.f32.mxu0 0.0
          %334 = vmatmul.mubr.f32.gmra.mrb[0].mxu0 %v247
          %v335 = vpop.f32.mrb[0].mxu0
          %v336 = vadd.f32 0.0, %v335
          %v337 = vpop.f32.mrb[0].mxu0
          %338 = vdwg.mxu0
          %339 = vst [vmem:[#allocation2] sm:$0xff] %v331
          %340 = vst [vmem:[#allocation2 + $0x8] sm:$0xff] %v336
        $region52: #{tpu_custom_call.1} parent=35 // pred_fallthru
          _
        %s341 = smul.u32 %s22, 8
        %s342 = scalar_lea.vmem [#allocation2], %s341
        %v343 = vld [vmem:[%s342] sm:$0xff]
        %v344 = vld [vmem:[%s213] sm:$0xff]
        %vm345 = vcmask 64512
        %v347 = vsel %vm345, %v344, 0
        %349 = vmatprep.subr.mxu0 0.0
        %350 = vmatpush1.msra.mxu0 %v343
        %351 = vmatprep.subr.mxu0 0.0
        %352 = vmatpush1.msra.mxu0 0.0
        %353 = vmatprep.subr.mxu0 0.0
        %354 = vmatpush1.msra.mxu0 0.0
        %355 = vmatprep.subr.mxu0 0.0
        %356 = vmatpush1.msra.mxu0 0.0
        %357 = vmatprep.subr.mxu0 0.0
        %358 = vmatpush1.msra.mxu0 0.0
        %359 = vmatprep.subr.mxu0 0.0
        %360 = vmatpush1.msra.mxu0 0.0
        %361 = vmatprep.subr.mxu0 0.0
        %362 = vmatpush1.msra.mxu0 0.0
        %363 = vmatprep.subr.mxu0 0.0
        %364 = vmatpush1.msra.mxu0 0.0
        %365 = vmatprep.subr.mxu0 0.0
        %366 = vmatpush1.msra.mxu0 0.0
        %367 = vmatprep.subr.mxu0 0.0
        %368 = vmatpush1.msra.mxu0 0.0
        %369 = vmatprep.subr.mxu0 0.0
        %370 = vmatpush1.msra.mxu0 0.0
        %371 = vmatprep.subr.mxu0 0.0
        %372 = vmatpush1.msra.mxu0 0.0
        %373 = vmatprep.subr.mxu0 0.0
        %374 = vmatpush1.msra.mxu0 0.0
        %375 = vmatprep.subr.mxu0 0.0
        %376 = vmatpush1.msra.mxu0 0.0
        %377 = vmatprep.subr.mxu0 0.0
        %378 = vmatpush1.msra.mxu0 0.0
        %379 = vmatprep.subr.mxu0 0.0
        %380 = vmatpush1.msra.mxu0 0.0
        %381 = vmatprep.subr.mxu0 0.0
        %382 = vmatpush1.msra.mxu0 0.0
        %383 = vmatprep.subr.mxu0 0.0
        %384 = vmatpush1.msra.mxu0 0.0
        %385 = vmatprep.subr.mxu0 0.0
        %386 = vmatpush1.msra.mxu0 0.0
        %387 = vmatprep.subr.mxu0 0.0
        %388 = vmatpush1.msra.mxu0 0.0
        %389 = vmatprep.subr.mxu0 0.0
        %390 = vmatpush1.msra.mxu0 0.0
        %391 = vmatprep.subr.mxu0 0.0
        %392 = vmatpush1.msra.mxu0 0.0
        %393 = vmatprep.subr.mxu0 0.0
        %394 = vmatpush1.msra.mxu0 0.0
        %395 = vmatprep.subr.mxu0 0.0
        %396 = vmatpush1.msra.mxu0 0.0
        %397 = vmatprep.subr.mxu0 0.0
        %398 = vmatpush1.msra.mxu0 0.0
        %399 = vmatprep.subr.mxu0 0.0
        %400 = vmatpush1.msra.mxu0 0.0
        %401 = vmatprep.subr.mxu0 0.0
        %402 = vmatpush1.msra.mxu0 0.0
        %403 = vmatprep.subr.mxu0 0.0
        %404 = vmatpush1.msra.mxu0 0.0
        %405 = vmatprep.subr.mxu0 0.0
        %406 = vmatpush1.msra.mxu0 0.0
        %407 = vmatprep.subr.mxu0 0.0
        %408 = vmatpush1.msra.mxu0 0.0
        %409 = vmatprep.subr.mxu0 0.0
        %410 = vmatpush1.msra.mxu0 0.0
        %411 = vmatprep.subr.mxu0 0.0
        %412 = vmatpush1.msra.mxu0 0.0
        %413 = vmatprep.mubr.f32.mxu0 0.0
        %414 = vmatmul.mubr.f32.gmra.mrb[0].mxu0 %v347
        %v415 = vpop.f32.mrb[0].mxu0
        %v416 = vadd.f32 0.0, %v415
        %v417 = vpop.f32.mrb[0].mxu0
        %418 = vdwg.mxu0
        %v419 = vadd.f32 %v416, 1.0
        %v420 = vrcp.pop %v419
        %422 = vset.pattern.permute.xlu0 32
        %423 = vperm.xlu0 %422, %v420
        %v424 = vpop.permute.xlu0 %423
        %v426 = vmul.f32 %v416, %v424
        %v427 = vld [vmem:[%s3] sm:$0x1]
        %v429 = vlaneseq
        %v430 = vshrl.u32 %v429, 7
        %v431 = vsub.s32 0, %v430
        %v432 = vrot.slane %v427, %v431
        %v434 = vadd.f32 %v426, %v432
        %435 = vst [vmem:[%s241] sm:$0xff] %v434
        %s436 = sand.u32 %s119, 1
        %s437 = scalar_lea.sflag [#allocation5], %s436
        %s438 = sand.u32 %s119, 1
        %s439 = smul.addr %s438, 8
        %s440 = scalar_lea.vmem [#allocation9], %s439
        // Predicated region
        $region53: #{tpu_custom_call.1} parent=35 // pred_check
          %p441 = pneg %p129
        $region54: #{tpu_custom_call.1} parent=35 // pred_check_branch
          %443 = sbr.rel (%p441) target = $region56
        $region55: #{tpu_custom_call.1} parent=35 // pred_region
          %s445 = ssub.s32 128, 128
          %446 = vsyncadd %s437, %s445
          %s447 = smul.addr %s22, 128
          %s448 = scalar_lea.hbm %s4, %s447
          %s450 = sshll.u32 %s440, 4
          %s451 = int_to_ptr.vmem [resolvable:$true] %s450
          %453 = dma.vmem_to_hbm [thread:$0]  %s451, 128, %s448, %s437
        $region56: #{tpu_custom_call.1} parent=35 // pred_fallthru
          _
      $region36: #{tpu_custom_call.1} parent=5 // pred_fallthru
        _
      %p454 = scmp.le.s32.totalorder 2, %s17
      // Predicated region
      $region57: #{tpu_custom_call.1} parent=5 // pred_check
        %p455 = pneg %p454
      $region58: #{tpu_custom_call.1} parent=5 // pred_check_branch
        %457 = sbr.rel (%p455) target = $region60
      $region59: #{tpu_custom_call.1} parent=5 // pred_region
        %s458 = ssub.s32 %s17, 2
        // Predicated region
        $region61: #{tpu_custom_call.1} parent=59 // pred_check
          %p459 = pneg %p135
        $region62: #{tpu_custom_call.1} parent=59 // pred_check_branch
          %461 = sbr.rel (%p459) target = $region64
        $region63: #{tpu_custom_call.1} parent=59 // pred_region
          %s462 = sand.u32 %s120, 1
          %s463 = scalar_lea.sflag [#allocation5], %s462
          %s464 = sand.u32 %s120, 1
          %s465 = smul.addr %s464, 8
          %s466 = scalar_lea.vmem [#allocation9], %s465
          %467 = dma.done %s463, 128
        $region64: #{tpu_custom_call.1} parent=59 // pred_fallthru
          _
      $region60: #{tpu_custom_call.1} parent=5 // pred_fallthru
        _
    $region6: #{tpu_custom_call.1} parent=1 // loop_footer
      %s21 = sadd.s32 1, %s17
    $region7: #{tpu_custom_call.1} parent=1 // loop_footer_branch
      %16 = sbr.rel target = $region3
    $region8: #{tpu_custom_call.1} parent=1 // loop_exit
      _
    %468 = vsyncpa [#allocation4], 1
    %s469 = scalar_lea.sflag [#allocation4], 1
    %470 = vsyncpa %s469, 1
    %471 = vsyncpa [#allocation7], 1
    %s472 = scalar_lea.sflag [#allocation7], 1
    %473 = vsyncpa %s472, 1
    %474 = vsyncpa [#allocation5], 1
    %s475 = scalar_lea.sflag [#allocation5], 1
    %476 = vsyncpa %s475, 1

</llo_original>
